<compile_context>
chip_gen: v5e
topology: v5e:2x2
jax: 0.10.0
libtpu: 0.0.40
codegen_flags: <defaults>
</compile_context>

<pallas_src>
import functools

import jax
import jax.numpy as jnp
from jax import lax
from jax.experimental import pallas as pl
from jax.experimental.pallas import tpu as pltpu


def _energy_cos_tile_kernel(p_ref, t_ref, f_ref, o_ref, *, batch, tile_rows, needs_mask):
    """One (TB, D) batch tile: writes sum over valid rows of (cos(p,f) + cos(t,f))."""
    eps2 = jnp.float32(1e-16)  # eps = 1e-8, squared (we clamp squared norms)

    p = p_ref[...].astype(jnp.float32)
    t = t_ref[...].astype(jnp.float32)
    f = f_ref[...].astype(jnp.float32)

    # Row-wise dot products and squared norms (lane reductions -> XLU, which has slack here).
    dot_pf = jnp.sum(p * f, axis=-1, keepdims=True)   # (TB, 1)
    dot_tf = jnp.sum(t * f, axis=-1, keepdims=True)
    ss_p = jnp.sum(p * p, axis=-1, keepdims=True)
    ss_t = jnp.sum(t * t, axis=-1, keepdims=True)
    ss_f = jnp.sum(f * f, axis=-1, keepdims=True)

    # cos = dot / (max(||a||,eps) * max(||b||,eps)) == dot * rsqrt(max(ss_a,eps^2) * max(ss_b,eps^2))
    # rsqrt goes to the otherwise-idle EUP slot; no sqrt + divide chain.
    ss_f_c = jnp.maximum(ss_f, eps2)
    cos_pf = dot_pf * lax.rsqrt(jnp.maximum(ss_p, eps2) * ss_f_c)
    cos_tf = dot_tf * lax.rsqrt(jnp.maximum(ss_t, eps2) * ss_f_c)
    cos = cos_pf + cos_tf                              # (TB, 1)

    if needs_mask:
        # Mask only the per-row cos column (not the (TB, D) inputs): padded tail rows of the
        # last tile contribute exactly 0; select discards any NaN/Inf from garbage rows.
        i = pl.program_id(0)
        row_ids = i * tile_rows + lax.broadcasted_iota(jnp.int32, (tile_rows, 1), 0)
        cos = jnp.where(row_ids < batch, cos, jnp.float32(0.0))

    partial = jnp.sum(cos)  # scalar partial sum for this tile

    # Lane/sublane-dense (1, 8, 128) output block -> single unmasked vector store.
    o_ref[...] = jnp.full(o_ref.shape, partial, dtype=jnp.float32)


def _vmem_capacity_bytes():
    try:
        cap = getattr(pltpu.get_tpu_info(), "vmem_capacity_bytes", None)
        if cap:
            return int(cap)
    except Exception:
        pass
    return 64 * 1024 * 1024  # conservative fallback (v7x physical VMEM per TC)


_TARGET_BLOCK_BYTES = 4 << 20   # ~4 MiB per input block keeps HBM DMA near roofline
_SINGLE_TILE_BYTES = 2 << 20    # above this, force >= 2 grid steps (v7x 2-TC sharding)


def _plan_tiles(B, D, itemsize, vmem_cap):
    """Pick (tile_rows, input_buffer_count) from bytes, dtype and VMEM capacity."""
    budget = vmem_cap // 3          # headroom for f32 cast temps, output bufs, compiler scratch
    row_in = D * itemsize           # one input row as DMA'd from HBM
    row_f32 = D * 4                 # one row of in-kernel f32 temporaries

    # Bandwidth-optimal tile: ~_TARGET_BLOCK_BYTES per input block.
    tb_target = max(_TARGET_BLOCK_BYTES // max(row_in, 1), 8)

    def max_tb(nbuf):
        per_row = 3 * nbuf * row_in + 3 * row_f32
        return budget // max(per_row, 1)

    # Prefer 3-deep input buffering (hides DMA issue bubbles at step boundaries) only if it
    # does not force tiles smaller than the bandwidth-optimal size.
    if max_tb(3) >= min(tb_target, B):
        nbuf, tb = 3, min(max_tb(3), tb_target)
    else:
        nbuf, tb = 2, min(max_tb(2), tb_target)

    tb = max(8, (int(tb) // 8) * 8)  # f32 sublane alignment

    if tb >= B:
        # A single tile covers everything. Keep it only if the block is small; otherwise split
        # into >= 2 grid steps so both TensorCores (v7x) can pull HBM in parallel.
        if B >= 16 and B * row_in > _SINGLE_TILE_BYTES:
            tb = min(B, max(8, ((pl.cdiv(B, 2) + 7) // 8) * 8))
        else:
            tb = B
    return int(tb), nbuf


def _make_in_spec(tb, D, nbuf):
    index_map = lambda i: (i, 0)
    if nbuf > 2:
        try:
            return pl.BlockSpec((tb, D), index_map, pipeline_mode=pl.Buffered(nbuf))
        except Exception:
            pass  # older jax without pipeline_mode / Buffered -> default 2-deep pipeline
    return pl.BlockSpec((tb, D), index_map)


def energy_loss_distill(p, t, f, *, tile_rows=None, buffer_count=None):
    """EnergyLossDistill.forward with criterion='cos'. p, t, f: (B, D) arrays."""
    assert p.shape == t.shape == f.shape and p.ndim == 2
    B, D = p.shape
    itemsize = jnp.dtype(p.dtype).itemsize
    vmem_cap = _vmem_capacity_bytes()

    if tile_rows is None:
        tb, nbuf_auto = _plan_tiles(B, D, itemsize, vmem_cap)
    else:
        tb = min(int(tile_rows), B)
        if tb < B:
            tb = max(8, (tb // 8) * 8)  # keep tiles sublane-aligned
        nbuf_auto = 2
    nbuf = int(buffer_count) if buffer_count is not None else nbuf_auto

    nt = pl.cdiv(B, tb)
    needs_mask = (B % tb) != 0
    use_buffered = (nbuf > 2) and (nt > 2)

    kernel = functools.partial(
        _energy_cos_tile_kernel, batch=B, tile_rows=tb, needs_mask=needs_mask
    )
    out_bytes = 2 * 8 * 128 * 4

    def run(nbuf_eff):
        block_bytes = 3 * nbuf_eff * tb * D * itemsize + 3 * tb * D * 4 + out_bytes
        vmem_limit = int(min(vmem_cap, max(block_bytes + (8 << 20), 32 << 20)))
        return pl.pallas_call(
            kernel,
            out_shape=jax.ShapeDtypeStruct((nt, 8, 128), jnp.float32),
            grid_spec=pltpu.PrefetchScalarGridSpec(
                num_scalar_prefetch=0,
                grid=(nt,),
                in_specs=[_make_in_spec(tb, D, nbuf_eff) for _ in range(3)],
                out_specs=pl.BlockSpec((1, 8, 128), lambda i: (i, 0, 0)),
            ),
            compiler_params=pltpu.CompilerParams(
                dimension_semantics=("parallel",),   # per-tile partials -> 2-TC friendly on v7x
                vmem_limit_bytes=vmem_limit,
            ),
            cost_estimate=pl.CostEstimate(
                flops=10 * B * D,
                transcendentals=2 * B,
                bytes_accessed=3 * B * D * itemsize + nt * 8 * 128 * 4,
            ),
        )(p, t, f)

    if use_buffered:
        try:
            partials = run(nbuf)
        except Exception:
            partials = run(2)  # conservative fallback if 3-deep buffering is unsupported
    else:
        partials = run(2)

    # Tiny final reduction outside the kernel (keeps the grid axis parallel-safe).
    cos_sum = jnp.sum(partials[:, 0, 0])
    return jnp.float32(2.0) - cos_sum / jnp.float32(B)


def _reference(p, t, f, eps=1e-8):
    """Pure-JAX reference matching PyTorch F.cosine_similarity's per-norm eps clamp."""
    def cos_loss(a, b):
        dot = jnp.sum(a * b, axis=-1)
        na = jnp.maximum(jnp.linalg.norm(a, axis=-1), eps)
        nb = jnp.maximum(jnp.linalg.norm(b, axis=-1), eps)
        return jnp.mean(1.0 - dot / (na * nb))
    return cos_loss(p, f) + cos_loss(t, f)


if __name__ == "__main__":
    key = jax.random.PRNGKey(0)
    kp, kt, kf = jax.random.split(key, 3)

    # Small shapes; B=20 with tile_rows=8 exercises the multi-tile grid AND the tail-row mask.
    B, D = 20, 256
    p = jax.random.normal(kp, (B, D), dtype=jnp.float32)
    t = jax.random.normal(kt, (B, D), dtype=jnp.float32)
    f = jax.random.normal(kf, (B, D), dtype=jnp.float32)

    ref = _reference(p, t, f)

    # Tiled path (grid=3, masked last tile).
    loss_tiled = jax.block_until_ready(energy_loss_distill(p, t, f, tile_rows=8))
    assert jnp.allclose(loss_tiled, ref, atol=1e-5, rtol=1e-5), (loss_tiled, ref)

    # Explicit 3-deep input buffering on the multi-tile path (falls back to the default 2-deep
    # pipeline if this jax build rejects pipeline_mode=Buffered).
    loss_buf = jax.block_until_ready(energy_loss_distill(p, t, f, tile_rows=8, buffer_count=3))
    assert jnp.allclose(loss_buf, ref, atol=1e-5, rtol=1e-5), (loss_buf, ref)

    # Auto-planned path (single full-array tile at this tiny shape).
    loss_auto = jax.block_until_ready(energy_loss_distill(p, t, f))
    assert jnp.allclose(loss_auto, ref, atol=1e-5, rtol=1e-5), (loss_auto, ref)

    # bf16 inputs exercise dtype-aware tile sizing; kernel still accumulates in f32.
    p_bf, t_bf, f_bf = (x.astype(jnp.bfloat16) for x in (p, t, f))
    ref_bf = _reference(p_bf.astype(jnp.float32), t_bf.astype(jnp.float32), f_bf.astype(jnp.float32))
    loss_bf = jax.block_until_ready(energy_loss_distill(p_bf, t_bf, f_bf))
    assert jnp.allclose(loss_bf, ref_bf, atol=1e-4, rtol=1e-4), (loss_bf, ref_bf)

    # Planner sanity (pure Python, no allocation): large inputs must split into >= 2 grid steps
    # so the "parallel" axis can shard across v7x's 2 TensorCores.
    tb_big, _ = _plan_tiles(4096, 1024, 4, 64 * 1024 * 1024)
    assert pl.cdiv(4096, tb_big) >= 2

    print("KERNEL_OK")
</pallas_src>

<mosaic_0001>
module attributes {stable_mosaic.version = 11 : i64} {
  func.func @_energy_cos_tile_kernel(%arg0: i32, %arg1: memref<8x256xf32, #tpu.memory_space<vmem>>, %arg2: memref<8x256xf32, #tpu.memory_space<vmem>>, %arg3: memref<8x256xf32, #tpu.memory_space<vmem>>, %arg4: memref<1x8x128xf32, #tpu.memory_space<vmem>>) attributes {dimension_semantics = [#tpu.dimension_semantics<parallel>], iteration_bounds = array<i64: 3>, scalar_prefetch = 0 : i64, scratch_operands = 0 : i64, tpu.core_type = #tpu.core_type<tc>, window_params = [{transform_indices = @transform_0, window_bounds = array<i64: 8, 256>}, {transform_indices = @transform_1, window_bounds = array<i64: 8, 256>}, {transform_indices = @transform_2, window_bounds = array<i64: 8, 256>}, {transform_indices = @transform_3, window_bounds = array<i64: 1, 8, 128>}]} {
    %c0 = arith.constant 0 : index
    %c0_0 = arith.constant 0 : index
    %0 = vector.load %arg1[%c0, %c0_0] : memref<8x256xf32, #tpu.memory_space<vmem>>, vector<8x256xf32>
    %c0_1 = arith.constant 0 : index
    %c0_2 = arith.constant 0 : index
    %1 = vector.load %arg2[%c0_1, %c0_2] : memref<8x256xf32, #tpu.memory_space<vmem>>, vector<8x256xf32>
    %c0_3 = arith.constant 0 : index
    %c0_4 = arith.constant 0 : index
    %2 = vector.load %arg3[%c0_3, %c0_4] : memref<8x256xf32, #tpu.memory_space<vmem>>, vector<8x256xf32>
    %3 = arith.mulf %0, %2 : vector<8x256xf32>
    %cst = arith.constant dense<0.000000e+00> : vector<8xf32>
    %4 = vector.multi_reduction <add>, %3, %cst [1] : vector<8x256xf32> to vector<8xf32>
    %5 = vector.shape_cast %4 : vector<8xf32> to vector<8x1xf32>
    %6 = arith.mulf %1, %2 : vector<8x256xf32>
    %cst_5 = arith.constant dense<0.000000e+00> : vector<8xf32>
    %7 = vector.multi_reduction <add>, %6, %cst_5 [1] : vector<8x256xf32> to vector<8xf32>
    %8 = vector.shape_cast %7 : vector<8xf32> to vector<8x1xf32>
    %9 = arith.mulf %0, %0 : vector<8x256xf32>
    %cst_6 = arith.constant dense<0.000000e+00> : vector<8xf32>
    %10 = vector.multi_reduction <add>, %9, %cst_6 [1] : vector<8x256xf32> to vector<8xf32>
    %11 = vector.shape_cast %10 : vector<8xf32> to vector<8x1xf32>
    %12 = arith.mulf %1, %1 : vector<8x256xf32>
    %cst_7 = arith.constant dense<0.000000e+00> : vector<8xf32>
    %13 = vector.multi_reduction <add>, %12, %cst_7 [1] : vector<8x256xf32> to vector<8xf32>
    %14 = vector.shape_cast %13 : vector<8xf32> to vector<8x1xf32>
    %15 = arith.mulf %2, %2 : vector<8x256xf32>
    %cst_8 = arith.constant dense<0.000000e+00> : vector<8xf32>
    %16 = vector.multi_reduction <add>, %15, %cst_8 [1] : vector<8x256xf32> to vector<8xf32>
    %17 = vector.shape_cast %16 : vector<8xf32> to vector<8x1xf32>
    %cst_9 = arith.constant 1.000000e-16 : f32
    %18 = vector.broadcast %cst_9 : f32 to vector<8x1xf32>
    %19 = arith.maximumf %17, %18 : vector<8x1xf32>
    %cst_10 = arith.constant 1.000000e-16 : f32
    %20 = vector.broadcast %cst_10 : f32 to vector<8x1xf32>
    %21 = arith.maximumf %11, %20 : vector<8x1xf32>
    %22 = arith.mulf %21, %19 : vector<8x1xf32>
    %23 = math.rsqrt %22 : vector<8x1xf32>
    %24 = arith.mulf %5, %23 : vector<8x1xf32>
    %cst_11 = arith.constant 1.000000e-16 : f32
    %25 = vector.broadcast %cst_11 : f32 to vector<8x1xf32>
    %26 = arith.maximumf %14, %25 : vector<8x1xf32>
    %27 = arith.mulf %26, %19 : vector<8x1xf32>
    %28 = math.rsqrt %27 : vector<8x1xf32>
    %29 = arith.mulf %8, %28 : vector<8x1xf32>
    %30 = arith.addf %24, %29 : vector<8x1xf32>
    %c8_i32 = arith.constant 8 : i32
    %31 = arith.muli %arg0, %c8_i32 : i32
    %32 = tpu.iota {dimensions = array<i32: 0>} : vector<8x1xi32>
    %33 = vector.broadcast %31 : i32 to vector<8x1xi32>
    %34 = arith.addi %33, %32 : vector<8x1xi32>
    %c20_i32 = arith.constant 20 : i32
    %35 = vector.broadcast %c20_i32 : i32 to vector<8x1xi32>
    %36 = arith.cmpi slt, %34, %35 : vector<8x1xi32>
    %cst_12 = arith.constant 0.000000e+00 : f32
    %37 = vector.broadcast %cst_12 : f32 to vector<8x1xf32>
    %38 = arith.select %36, %30, %37 : vector<8x1xi1>, vector<8x1xf32>
    %39 = vector.shape_cast %38 : vector<8x1xf32> to vector<1x8x1xf32>
    %cst_13 = arith.constant dense<0.000000e+00> : vector<1xf32>
    %40 = vector.multi_reduction <add>, %39, %cst_13 [1, 2] : vector<1x8x1xf32> to vector<1xf32>
    %41 = vector.shape_cast %40 : vector<1xf32> to vector<1x1x1xf32>
    %42 = vector.extract %41[0, 0, 0] : f32 from vector<1x1x1xf32>
    %43 = vector.broadcast %42 : f32 to vector<1x8x128xf32>
    %c0_14 = arith.constant 0 : index
    %c0_15 = arith.constant 0 : index
    %c0_16 = arith.constant 0 : index
    %44 = vector.load %arg4[%c0_14, %c0_15, %c0_16] : memref<1x8x128xf32, #tpu.memory_space<vmem>>, vector<1x8x128xf32>
    tpu.vector_store %arg4[%c0_14, %c0_15, %c0_16], %43 {strides = array<i32>} : memref<1x8x128xf32, #tpu.memory_space<vmem>>, vector<1x8x128xf32>,
    return
  }
  func.func @transform_0(%arg0: i32) -> (i32, i32) {
    %c0_i32 = arith.constant 0 : i32
    %c0_i32_0 = arith.constant 0 : i32
    return %arg0, %c0_i32 : i32, i32
  }
  func.func @transform_1(%arg0: i32) -> (i32, i32) {
    %c0_i32 = arith.constant 0 : i32
    %c0_i32_0 = arith.constant 0 : i32
    return %arg0, %c0_i32 : i32, i32
  }
  func.func @transform_2(%arg0: i32) -> (i32, i32) {
    %c0_i32 = arith.constant 0 : i32
    %c0_i32_0 = arith.constant 0 : i32
    return %arg0, %c0_i32 : i32, i32
  }
  func.func @transform_3(%arg0: i32) -> (i32, i32, i32) {
    %c0_i32 = arith.constant 0 : i32
    %c0_i32_0 = arith.constant 0 : i32
    %c0_i32_1 = arith.constant 0 : i32
    return %arg0, %c0_i32, %c0_i32_0 : i32, i32, i32
  }
}

</mosaic_0001>

<llo_original>
// kernel: tpu_custom_call.1
$region0: #{tpu_custom_call.1}
  #allocation0 [shape = 'u32[]', space=smem, size = 0x4, offset = 0x4, fixed_abs, tag = 'smem constant byte address 0x4 - core index']
  #allocation1 [shape = 'u32[72,128]{1,0:T(1,128)}', space=vmem, size = 0x9000, scoped, tag = 'internal scratch']
  %s0 = inlined_call_operand.hbm [shape: f32[20,256], index: 0, kind: input, shape index: {}]
  %s1 = inlined_call_operand.hbm [shape: f32[20,256], index: 1, kind: input, shape index: {}]
  %s2 = inlined_call_operand.hbm [shape: f32[20,256], index: 2, kind: input, shape index: {}]
  %s3 = inlined_call_operand.hbm [shape: f32[3,8,128], index: 3, kind: output, shape index: {}]
  %s4 = sld [smem:[#allocation0]]
  $region57: #{tpu_custom_call.1} parent=0
    _
  %s6 = ssub.s32 1, %s4
  %s7 = scalar_select 0, %s6, %s4
  $region1: #{tpu_custom_call.1} parent=0
    #allocation2 [shape = 'u8[16384]{0}', space=vmem, size = 0x4000, scoped, tag = 'input window, operand 0']
    #allocation3 [shape = 's32[2]{0}', space=sflag, size = 0x8, scoped, tag = 'scoped memory for tpu_custom_call.1']
    #allocation4 [shape = 's32[2]{0}', space=sflag, size = 0x8, scoped, tag = 'scoped memory for tpu_custom_call.1']
    #allocation5 [shape = 'u8[16384]{0}', space=vmem, size = 0x4000, scoped, tag = 'input window, operand 1']
    #allocation6 [shape = 's32[2]{0}', space=sflag, size = 0x8, scoped, tag = 'scoped memory for tpu_custom_call.1']
    #allocation7 [shape = 'u8[16384]{0}', space=vmem, size = 0x4000, scoped, tag = 'input window, operand 2']
    #allocation8 [shape = 'u8[8192]{0}', space=vmem, size = 0x2000, scoped, tag = 'output window, operand 0']
    %8 = vsyncpa [#allocation3], 0
    %s9 = scalar_lea.sflag [#allocation3], 1
    %10 = vsyncpa %s9, 0
    %11 = vsyncpa [#allocation6], 0
    %s12 = scalar_lea.sflag [#allocation6], 1
    %13 = vsyncpa %s12, 0
    %14 = vsyncpa [#allocation4], 0
    %s15 = scalar_lea.sflag [#allocation4], 1
    %16 = vsyncpa %s15, 0
    loop: start=0, step=1, limit=5
    $region2: #{tpu_custom_call.1} parent=1 // loop_pre_header
      _
    $region3: #{tpu_custom_call.1} parent=1 // loop_header
      %s18 = sphi 0, %s22
      %p19 = scmp.ge.s32.totalorder %s18, 5
      %s28 = sphi 0, %s30
      %s31 = sphi 0, %s28
      %s32 = sphi 0, %s31
      %s48 = sphi 0, %s32
      %s54 = sphi 0, %s56
      %s57 = sphi 0, %s54
      %s58 = sphi 0, %s57
      %s74 = sphi 0, %s58
      %s80 = sphi 0, %s82
      %s83 = sphi 0, %s80
      %s84 = sphi 0, %s83
      %s100 = sphi 0, %s84
      %s106 = sphi 0, %s108
      %s109 = sphi 0, %s106
      %s110 = sphi 0, %s109
      %s126 = sphi 0, %s110
    $region4: #{tpu_custom_call.1} parent=1 // loop_header_branch
      %21 = sbr.rel (%p19) target = $region8
    $region5: #{tpu_custom_call.1} parent=1 // loop_body
      %s23 = ssub.s32 %s18, 1
      %s24 = ssub.s32 %s18, 2
      %s25 = sadd.s32 %s18, 1
      %s26 = ssub.s32 %s18, %s25
      %p27 = scmp.eq.s32.totalorder %s26, 0
      %s29 = sadd.s32 %s28, 1
      %s30 = scalar_select %p27, %s28, %s29
      %p33 = pneg %p27
      %p34 = scmp.eq.s32.totalorder %s18, 2
      %p35 = por %p33, %p34
      %p36 = scmp.ne.s32.totalorder %s28, %s31
      %p37 = scmp.eq.s32.totalorder %s18, 0
      %p38 = por %p36, %p37
      %p39 = scmp.ne.s32.totalorder %s28, %s31
      %p40 = scmp.eq.s32.totalorder %s23, 2
      %p41 = por %p39, %p40
      %p42 = scmp.ne.s32.totalorder %s31, %s32
      %p43 = scmp.eq.s32.totalorder %s23, 0
      %p44 = por %p42, %p43
      %p45 = scmp.ne.s32.totalorder %s31, %s32
      %p46 = scmp.eq.s32.totalorder %s24, 2
      %p47 = por %p45, %p46
      %p49 = scmp.ne.s32.totalorder %s32, %s48
      %p50 = scmp.eq.s32.totalorder %s24, 0
      %p51 = por %p49, %p50
      %s52 = ssub.s32 %s18, %s25
      %p53 = scmp.eq.s32.totalorder %s52, 0
      %s55 = sadd.s32 %s54, 1
      %s56 = scalar_select %p53, %s54, %s55
      %p59 = pneg %p53
      %p60 = scmp.eq.s32.totalorder %s18, 2
      %p61 = por %p59, %p60
      %p62 = scmp.ne.s32.totalorder %s54, %s57
      %p63 = scmp.eq.s32.totalorder %s18, 0
      %p64 = por %p62, %p63
      %p65 = scmp.ne.s32.totalorder %s54, %s57
      %p66 = scmp.eq.s32.totalorder %s23, 2
      %p67 = por %p65, %p66
      %p68 = scmp.ne.s32.totalorder %s57, %s58
      %p69 = scmp.eq.s32.totalorder %s23, 0
      %p70 = por %p68, %p69
      %p71 = scmp.ne.s32.totalorder %s57, %s58
      %p72 = scmp.eq.s32.totalorder %s24, 2
      %p73 = por %p71, %p72
      %p75 = scmp.ne.s32.totalorder %s58, %s74
      %p76 = scmp.eq.s32.totalorder %s24, 0
      %p77 = por %p75, %p76
      %s78 = ssub.s32 %s18, %s25
      %p79 = scmp.eq.s32.totalorder %s78, 0
      %s81 = sadd.s32 %s80, 1
      %s82 = scalar_select %p79, %s80, %s81
      %p85 = pneg %p79
      %p86 = scmp.eq.s32.totalorder %s18, 2
      %p87 = por %p85, %p86
      %p88 = scmp.ne.s32.totalorder %s80, %s83
      %p89 = scmp.eq.s32.totalorder %s18, 0
      %p90 = por %p88, %p89
      %p91 = scmp.ne.s32.totalorder %s80, %s83
      %p92 = scmp.eq.s32.totalorder %s23, 2
      %p93 = por %p91, %p92
      %p94 = scmp.ne.s32.totalorder %s83, %s84
      %p95 = scmp.eq.s32.totalorder %s23, 0
      %p96 = por %p94, %p95
      %p97 = scmp.ne.s32.totalorder %s83, %s84
      %p98 = scmp.eq.s32.totalorder %s24, 2
      %p99 = por %p97, %p98
      %p101 = scmp.ne.s32.totalorder %s84, %s100
      %p102 = scmp.eq.s32.totalorder %s24, 0
      %p103 = por %p101, %p102
      %s104 = ssub.s32 %s18, %s25
      %p105 = scmp.eq.s32.totalorder %s104, 0
      %s107 = sadd.s32 %s106, 1
      %s108 = scalar_select %p105, %s106, %s107
      %p111 = pneg %p105
      %p112 = scmp.eq.s32.totalorder %s18, 2
      %p113 = por %p111, %p112
      %p114 = scmp.ne.s32.totalorder %s106, %s109
      %p115 = scmp.eq.s32.totalorder %s18, 0
      %p116 = por %p114, %p115
      %p117 = scmp.ne.s32.totalorder %s106, %s109
      %p118 = scmp.eq.s32.totalorder %s23, 2
      %p119 = por %p117, %p118
      %p120 = scmp.ne.s32.totalorder %s109, %s110
      %p121 = scmp.eq.s32.totalorder %s23, 0
      %p122 = por %p120, %p121
      %p123 = scmp.ne.s32.totalorder %s109, %s110
      %p124 = scmp.eq.s32.totalorder %s24, 2
      %p125 = por %p123, %p124
      %p127 = scmp.ne.s32.totalorder %s110, %s126
      %p128 = scmp.eq.s32.totalorder %s24, 0
      %p129 = por %p127, %p128
      %p130 = scmp.le.s32.totalorder 1, %s18
      %p131 = scmp.lt.s32.totalorder %s18, 4
      %p132 = pnand %p130, %p131
      %p133 = pneg %p132
      // Predicated region
      $region9: #{tpu_custom_call.1} parent=5 // pred_check
        _
      $region10: #{tpu_custom_call.1} parent=5 // pred_check_branch
        %135 = sbr.rel (%p132) target = $region12
      $region11: #{tpu_custom_call.1} parent=5 // pred_region
        %s136 = ssub.s32 %s18, 1
      $region12: #{tpu_custom_call.1} parent=5 // pred_fallthru
        _
      %p137 = scmp.lt.s32.totalorder %s18, 3
      // Predicated region
      $region13: #{tpu_custom_call.1} parent=5 // pred_check
        %p138 = pneg %p137
      $region14: #{tpu_custom_call.1} parent=5 // pred_check_branch
        %140 = sbr.rel (%p138) target = $region16
      $region15: #{tpu_custom_call.1} parent=5 // pred_region
        // Predicated region
        $region17: #{tpu_custom_call.1} parent=15 // pred_check
          %p141 = pneg %p38
        $region18: #{tpu_custom_call.1} parent=15 // pred_check_branch
          %143 = sbr.rel (%p141) target = $region20
        $region19: #{tpu_custom_call.1} parent=15 // pred_region
          %s144 = sand.u32 %s28, 1
          %s145 = scalar_lea.sflag [#allocation3], %s144
          %s146 = sand.u32 %s28, 1
          %s147 = smul.addr %s146, 16
          %s148 = scalar_lea.vmem [#allocation2], %s147
          %150 = vsyncadd %s145, 0
          %s151 = smul.addr %s18, 2
          %s152 = smul.addr %s151, 8
          %s153 = scalar_lea.hbm %s0, %s152
          %s155 = sshll.u32 %s153, 4
          %s156 = int_to_ptr.hbm [resolvable:$true] %s155
          %s157 = sshll.u32 %s148, 4
          %s158 = int_to_ptr.vmem [resolvable:$true] %s157
          %160 = dma.hbm_to_vmem [thread:$0]  %s156, 256, %s158, %s145
        $region20: #{tpu_custom_call.1} parent=15 // pred_fallthru
          _
        // Predicated region
        $region21: #{tpu_custom_call.1} parent=15 // pred_check
          %p161 = pneg %p64
        $region22: #{tpu_custom_call.1} parent=15 // pred_check_branch
          %163 = sbr.rel (%p161) target = $region24
        $region23: #{tpu_custom_call.1} parent=15 // pred_region
          %s164 = sand.u32 %s18, 1
          %s165 = scalar_lea.sflag [#allocation6], %s164
          %s166 = sand.u32 %s54, 1
          %s167 = smul.addr %s166, 16
          %s168 = scalar_lea.vmem [#allocation5], %s167
          %170 = vsyncadd %s165, 0
          %s171 = smul.addr %s18, 2
          %s172 = smul.addr %s171, 8
          %s173 = scalar_lea.hbm %s1, %s172
          %s175 = sshll.u32 %s173, 4
          %s176 = int_to_ptr.hbm [resolvable:$true] %s175
          %s177 = sshll.u32 %s168, 4
          %s178 = int_to_ptr.vmem [resolvable:$true] %s177
          %180 = dma.hbm_to_vmem [thread:$0]  %s176, 256, %s178, %s165
        $region24: #{tpu_custom_call.1} parent=15 // pred_fallthru
          _
        // Predicated region
        $region25: #{tpu_custom_call.1} parent=15 // pred_check
          %p181 = pneg %p90
        $region26: #{tpu_custom_call.1} parent=15 // pred_check_branch
          %183 = sbr.rel (%p181) target = $region28
        $region27: #{tpu_custom_call.1} parent=15 // pred_region
          %s184 = sand.u32 %s18, 1
          %s185 = scalar_lea.sflag [#allocation6], %s184
          %s186 = sand.u32 %s80, 1
          %s187 = smul.addr %s186, 16
          %s188 = scalar_lea.vmem [#allocation7], %s187
          %190 = vsyncadd %s185, 0
          %s191 = smul.addr %s18, 2
          %s192 = smul.addr %s191, 8
          %s193 = scalar_lea.hbm %s2, %s192
          %s195 = sshll.u32 %s193, 4
          %s196 = int_to_ptr.hbm [resolvable:$true] %s195
          %s197 = sshll.u32 %s188, 4
          %s198 = int_to_ptr.vmem [resolvable:$true] %s197
          %200 = dma.hbm_to_vmem [thread:$0]  %s196, 256, %s198, %s185
        $region28: #{tpu_custom_call.1} parent=15 // pred_fallthru
          _
      $region16: #{tpu_custom_call.1} parent=5 // pred_fallthru
        _
      %p201 = scmp.le.s32.totalorder 1, %s18
      %p202 = scmp.lt.s32.totalorder %s18, 4
      %p203 = pnand %p201, %p202
      %p204 = pneg %p203
      // Predicated region
      $region29: #{tpu_custom_call.1} parent=5 // pred_check
        _
      $region30: #{tpu_custom_call.1} parent=5 // pred_check_branch
        %206 = sbr.rel (%p203) target = $region32
      $region31: #{tpu_custom_call.1} parent=5 // pred_region
        %s207 = ssub.s32 %s18, 1
        %s208 = sand.u32 %s31, 1
        %s209 = scalar_lea.sflag [#allocation3], %s208
        %s210 = sand.u32 %s31, 1
        %s211 = smul.addr %s210, 16
        %s212 = scalar_lea.vmem [#allocation2], %s211
        // Predicated region
        $region33: #{tpu_custom_call.1} parent=31 // pred_check
          %p213 = pneg %p44
        $region34: #{tpu_custom_call.1} parent=31 // pred_check_branch
          %215 = sbr.rel (%p213) target = $region36
        $region35: #{tpu_custom_call.1} parent=31 // pred_region
          %217 = dma.done %s209, 256
        $region36: #{tpu_custom_call.1} parent=31 // pred_fallthru
          _
        %s218 = sand.u32 %s23, 1
        %s219 = scalar_lea.sflag [#allocation6], %s218
        %s220 = sand.u32 %s57, 1
        %s221 = smul.addr %s220, 16
        %s222 = scalar_lea.vmem [#allocation5], %s221
        // Predicated region
        $region37: #{tpu_custom_call.1} parent=31 // pred_check
          %p223 = pneg %p70
        $region38: #{tpu_custom_call.1} parent=31 // pred_check_branch
          %225 = sbr.rel (%p223) target = $region40
        $region39: #{tpu_custom_call.1} parent=31 // pred_region
          %227 = dma.done %s219, 256
        $region40: #{tpu_custom_call.1} parent=31 // pred_fallthru
          _
        %s228 = sand.u32 %s23, 1
        %s229 = scalar_lea.sflag [#allocation6], %s228
        %s230 = sand.u32 %s83, 1
        %s231 = smul.addr %s230, 16
        %s232 = scalar_lea.vmem [#allocation7], %s231
        // Predicated region
        $region41: #{tpu_custom_call.1} parent=31 // pred_check
          %p233 = pneg %p96
        $region42: #{tpu_custom_call.1} parent=31 // pred_check_branch
          %235 = sbr.rel (%p233) target = $region44
        $region43: #{tpu_custom_call.1} parent=31 // pred_region
          %237 = dma.done %s229, 256
        $region44: #{tpu_custom_call.1} parent=31 // pred_fallthru
          _
        %s238 = sand.u32 %s31, 1
        %s239 = scalar_lea.sflag [#allocation3], %s238
        %s240 = sand.u32 %s31, 1
        %s241 = smul.addr %s240, 16
        %s242 = scalar_lea.vmem [#allocation2], %s241
        %p243 = pneg %p44
        %p244 = pneg %p41
        %s245 = sand.u32 %s23, 1
        %s246 = scalar_lea.sflag [#allocation6], %s245
        %s247 = sand.u32 %s57, 1
        %s248 = smul.addr %s247, 16
        %s249 = scalar_lea.vmem [#allocation5], %s248
        %p250 = pneg %p70
        %p251 = pneg %p67
        %s252 = sand.u32 %s23, 1
        %s253 = scalar_lea.sflag [#allocation6], %s252
        %s254 = sand.u32 %s83, 1
        %s255 = smul.addr %s254, 16
        %s256 = scalar_lea.vmem [#allocation7], %s255
        %p257 = pneg %p96
        %p258 = pneg %p93
        %p259 = pneg %p122
        %p260 = pneg %p119
        %s261 = sand.u32 %s109, 1
        %s262 = scalar_lea.sflag [#allocation4], %s261
        %s263 = sand.u32 %s109, 1
        %s264 = smul.addr %s263, 8
        %s265 = scalar_lea.vmem [#allocation8], %s264
        %v266 = vld [vmem:[%s212] sm:$0xff]
        %v267 = vld [vmem:[%s212 + $0x8] sm:$0xff]
        %v268 = vld [vmem:[%s222] sm:$0xff]
        %v269 = vld [vmem:[%s222 + $0x8] sm:$0xff]
        %v270 = vld [vmem:[%s232] sm:$0xff]
        %v271 = vld [vmem:[%s232 + $0x8] sm:$0xff]
        %v272 = vmul.f32 %v266, %v270
        %v273 = vmul.f32 %v267, %v271
        %v274 = vadd.f32 %v272, %v273
        %275 = vadd.xlane.f32.xlu0 %v274
        %v276 = vpop.xlane.xlu0 %275
        %v277 = vmul.f32 %v268, %v270
        %v278 = vmul.f32 %v269, %v271
        %v279 = vadd.f32 %v277, %v278
        %280 = vadd.xlane.f32.xlu0 %v279
        %v281 = vpop.xlane.xlu0 %280
        %v282 = vmul.f32 %v266, %v266
        %v283 = vmul.f32 %v267, %v267
        %v284 = vadd.f32 %v282, %v283
        %285 = vadd.xlane.f32.xlu0 %v284
        %v286 = vpop.xlane.xlu0 %285
        %v287 = vmul.f32 %v268, %v268
        %v288 = vmul.f32 %v269, %v269
        %v289 = vadd.f32 %v287, %v288
        %290 = vadd.xlane.f32.xlu0 %v289
        %v291 = vpop.xlane.xlu0 %290
        %v292 = vmul.f32 %v270, %v270
        %v293 = vmul.f32 %v271, %v271
        %v294 = vadd.f32 %v292, %v293
        %295 = vadd.xlane.f32.xlu0 %v294
        %v296 = vpop.xlane.xlu0 %295
        %v297 = vmax.f32 %v296, 1e-16
        %v298 = vmax.f32 %v286, 1e-16
        %v299 = vmul.f32 %v298, %v297
        %v300 = vrsqrt.pop %v299
        %v301 = vmul.f32 %v300, %v299
        %v302 = vmul.f32 %v301, %v300
        %v303 = vmul.f32 0.5, %v302
        %v304 = vsub.f32 1.5, %v303
        %v305 = vmul.f32 %v300, %v304
        %vm306 = vweird.f32 %v299
        %vm307 = vweird.f32 %v300
        %vm308 = vmor %vm306, %vm307
        %v309 = vsel %vm308, %v300, %v305
        %v310 = vmul.f32 %v276, %v309
        %v311 = vmax.f32 %v291, 1e-16
        %v312 = vmul.f32 %v311, %v297
        %v313 = vrsqrt.pop %v312
        %v314 = vmul.f32 %v313, %v312
        %v315 = vmul.f32 %v314, %v313
        %v316 = vmul.f32 0.5, %v315
        %v317 = vsub.f32 1.5, %v316
        %v318 = vmul.f32 %v313, %v317
        %vm319 = vweird.f32 %v312
        %vm320 = vweird.f32 %v313
        %vm321 = vmor %vm319, %vm320
        %v322 = vsel %vm321, %v313, %v318
        %v323 = vmul.f32 %v281, %v322
        %v324 = vadd.f32 %v310, %v323
        %s325 = smul.u32 %s23, 8
        %v326 = vlaneseq
        %v327 = vshrl.u32 %v326, 7
        %v328 = vstv %s325
        %v329 = vadd.s32 %v328, %v327
        %vm330 = vcmp.lt.s32.totalorder %v329, 20
        %v331 = vsel %vm330, %v324, 0.0
        %vm332 = vcmask 7168
        %v333 = vsel %vm332, %v331, 0.0
        %334 = vadd.xlane.f32.xlu0 %v333
        %v335 = vpop.xlane.xlu0 %334
        %v336 = vrot.slane %v335, 4
        %v337 = vadd.f32 %v335, %v336
        %v338 = vrot.slane %v337, 2
        %v339 = vadd.f32 %v337, %v338
        %v340 = vrot.slane %v339, 1
        %v341 = vadd.f32 %v339, %v340
        %s342 = vtos %v341
        %v343 = vstv %s342
        %344 = vst [vmem:[%s265] sm:$0xff] %v343
        %s345 = sand.u32 %s109, 1
        %s346 = scalar_lea.sflag [#allocation4], %s345
        %s347 = sand.u32 %s109, 1
        %s348 = smul.addr %s347, 8
        %s349 = scalar_lea.vmem [#allocation8], %s348
        // Predicated region
        $region45: #{tpu_custom_call.1} parent=31 // pred_check
          %p350 = pneg %p119
        $region46: #{tpu_custom_call.1} parent=31 // pred_check_branch
          %352 = sbr.rel (%p350) target = $region48
        $region47: #{tpu_custom_call.1} parent=31 // pred_region
          %354 = vsyncadd %s346, 0
          %s355 = smul.addr %s23, 8
          %s356 = scalar_lea.hbm %s3, %s355
          %s358 = sshll.u32 %s349, 4
          %s359 = int_to_ptr.vmem [resolvable:$true] %s358
          %s360 = sshll.u32 %s356, 4
          %s361 = int_to_ptr.hbm [resolvable:$true] %s360
          %363 = dma.vmem_to_hbm [thread:$0]  %s359, 128, %s361, %s346
        $region48: #{tpu_custom_call.1} parent=31 // pred_fallthru
          _
      $region32: #{tpu_custom_call.1} parent=5 // pred_fallthru
        _
      %p364 = scmp.le.s32.totalorder 2, %s18
      // Predicated region
      $region49: #{tpu_custom_call.1} parent=5 // pred_check
        %p365 = pneg %p364
      $region50: #{tpu_custom_call.1} parent=5 // pred_check_branch
        %367 = sbr.rel (%p365) target = $region52
      $region51: #{tpu_custom_call.1} parent=5 // pred_region
        %s368 = ssub.s32 %s18, 2
        // Predicated region
        $region53: #{tpu_custom_call.1} parent=51 // pred_check
          %p369 = pneg %p125
        $region54: #{tpu_custom_call.1} parent=51 // pred_check_branch
          %371 = sbr.rel (%p369) target = $region56
        $region55: #{tpu_custom_call.1} parent=51 // pred_region
          %s372 = sand.u32 %s110, 1
          %s373 = scalar_lea.sflag [#allocation4], %s372
          %s374 = sand.u32 %s110, 1
          %s375 = smul.addr %s374, 8
          %s376 = scalar_lea.vmem [#allocation8], %s375
          %378 = dma.done %s373, 128
        $region56: #{tpu_custom_call.1} parent=51 // pred_fallthru
          _
      $region52: #{tpu_custom_call.1} parent=5 // pred_fallthru
        _
    $region6: #{tpu_custom_call.1} parent=1 // loop_footer
      %s22 = sadd.s32 1, %s18
    $region7: #{tpu_custom_call.1} parent=1 // loop_footer_branch
      %17 = sbr.rel target = $region3
    $region8: #{tpu_custom_call.1} parent=1 // loop_exit
      _
    %379 = vsyncpa [#allocation3], 1
    %s380 = scalar_lea.sflag [#allocation3], 1
    %381 = vsyncpa %s380, 1
    %382 = vsyncpa [#allocation6], 1
    %s383 = scalar_lea.sflag [#allocation6], 1
    %384 = vsyncpa %s383, 1
    %385 = vsyncpa [#allocation4], 1
    %s386 = scalar_lea.sflag [#allocation4], 1
    %387 = vsyncpa %s386, 1

</llo_original>
